<compile_context>
chip_gen: v7x
topology: tpu7x:2x2x1
jax: 0.10.0
libtpu: 0.0.40
codegen_flags: <defaults>
</compile_context>

<pallas_src>
import functools

import jax
import jax.numpy as jnp
from jax import lax
from jax.experimental import pallas as pl
from jax.experimental.pallas import tpu as pltpu

LANES = 128          # vreg lane width; last dim of the slab
SUB = 16             # sublane granularity for tiles (safe for f32 and bf16)
CHUNK = SUB * LANES  # elements handled per row-group; tail below this -> JAX
TM_MAX = 8192        # max rows per tile -> (8192, 128) f32 = 4 MiB per input
SPLIT_ROWS = 1024    # above this, force >= 2 grid blocks (v7x 2-TC sharding)


def _round_up(x, m):
    return ((x + m - 1) // m) * m


def _mse_partial_kernel(x_ref, y_ref, o_ref, *, tm, rows, needs_mask):
    """Fold one (tm, 128) tile of squared differences into a (1, 8, 128) partial."""
    x = x_ref[...].astype(jnp.float32)
    y = y_ref[...].astype(jnp.float32)
    d = x - y
    dd = d * d

    def _fold(v):
        # (tm, 128) -> (tm//8, 8, 128) groups whole vregs; the axis-0 sum is
        # pure full-vreg VPU adds and the store is an unmasked (8,128) slab.
        return v.reshape(tm // 8, 8, LANES).sum(axis=0)[None]

    if needs_mask:
        i = pl.program_id(0)
        is_last = i == pl.num_programs(0) - 1

        @pl.when(is_last)
        def _():
            # Last tile may read past the true row extent (undefined data);
            # zero those rows with a select so nothing (incl. NaN) propagates.
            row_ids = lax.broadcasted_iota(jnp.int32, (tm, LANES), 0) + i * tm
            o_ref[...] = _fold(jnp.where(row_ids < rows, dd, 0.0))

        @pl.when(i != pl.num_programs(0) - 1)
        def _():
            o_ref[...] = _fold(dd)
    else:
        o_ref[...] = _fold(dd)


def mse_loss(recon, target):
    """Mean-squared-error over all elements, computed with a Pallas kernel."""
    assert recon.shape == target.shape, "shapes must match (no broadcasting)"
    n = recon.size

    xf = recon.reshape(-1)
    yf = target.reshape(-1)

    # Split into a vreg-aligned prefix (kernel) and a tiny tail (plain JAX).
    n_main = (n // CHUNK) * CHUNK

    if n_main > 0:
        rows = n_main // LANES          # always a multiple of SUB (16)
        x2d = xf[:n_main].reshape(rows, LANES)   # free reshape of contiguous data
        y2d = yf[:n_main].reshape(rows, LANES)

        # Tile selection: single full block for small slabs; otherwise >= 2
        # blocks (even count preferred) so v7x's 2 TensorCores both stream.
        if rows <= SPLIT_ROWS:
            tm = rows
        else:
            pairs = max(1, pl.cdiv(rows, 2 * TM_MAX))
            tm = min(TM_MAX, _round_up(pl.cdiv(rows, 2 * pairs), SUB))
        num_blocks = pl.cdiv(rows, tm)
        needs_mask = (rows % tm) != 0

        kernel = functools.partial(
            _mse_partial_kernel, tm=tm, rows=rows, needs_mask=needs_mask)

        in_bytes = n_main * (recon.dtype.itemsize + target.dtype.itemsize)
        out_bytes = num_blocks * 8 * LANES * 4

        partials = pl.pallas_call(
            kernel,
            out_shape=jax.ShapeDtypeStruct((num_blocks, 8, LANES), jnp.float32),
            grid=(num_blocks,),
            in_specs=[
                pl.BlockSpec((tm, LANES), lambda i: (i, 0)),
                pl.BlockSpec((tm, LANES), lambda i: (i, 0)),
            ],
            out_specs=pl.BlockSpec((1, 8, LANES), lambda i: (i, 0, 0)),
            compiler_params=pltpu.CompilerParams(
                dimension_semantics=("parallel",),
                vmem_limit_bytes=48 * 1024 * 1024,
            ),
            cost_estimate=pl.CostEstimate(
                flops=3 * n_main,
                transcendentals=0,
                bytes_accessed=in_bytes + out_bytes,
            ),
        )(x2d, y2d)

        main_sum = jnp.sum(partials, dtype=jnp.float32)
    else:
        main_sum = jnp.float32(0.0)

    # Tail (< CHUNK elements): trivial plain-JAX sum, avoids full-tensor pads.
    if n_main < n:
        dt = xf[n_main:].astype(jnp.float32) - yf[n_main:].astype(jnp.float32)
        tail_sum = jnp.sum(dt * dt)
    else:
        tail_sum = jnp.float32(0.0)

    return (main_sum + tail_sum) / jnp.float32(n)


if __name__ == "__main__":
    key = jax.random.PRNGKey(0)
    k1, k2 = jax.random.split(key)
    # NCHW inputs, as the PyTorch module would receive (recon vs target images).
    recon = jax.random.normal(k1, (2, 4, 16, 16), dtype=jnp.float32)
    target = jax.random.normal(k2, (2, 4, 16, 16), dtype=jnp.float32)

    loss = mse_loss(recon, target)
    jax.block_until_ready(loss)

    # Cross-check against plain JAX reference.
    ref = jnp.mean((recon - target) ** 2)
    assert jnp.allclose(loss, ref, rtol=1e-6, atol=1e-6), (loss, ref)

    print("KERNEL_OK")
</pallas_src>

<mosaic_0001>
module attributes {stable_mosaic.version = 11 : i64} {
  func.func @_mse_partial_kernel(%arg0: i32, %arg1: memref<16x128xf32, #tpu.memory_space<vmem>>, %arg2: memref<16x128xf32, #tpu.memory_space<vmem>>, %arg3: memref<1x8x128xf32, #tpu.memory_space<vmem>>) attributes {dimension_semantics = [#tpu.dimension_semantics<parallel>], iteration_bounds = array<i64: 1>, scalar_prefetch = 0 : i64, scratch_operands = 0 : i64, tpu.core_type = #tpu.core_type<tc>, window_params = [{transform_indices = @transform_0, window_bounds = array<i64: 16, 128>}, {transform_indices = @transform_1, window_bounds = array<i64: 16, 128>}, {transform_indices = @transform_2, window_bounds = array<i64: 1, 8, 128>}]} {
    %c0 = arith.constant 0 : index
    %c0_0 = arith.constant 0 : index
    %0 = vector.load %arg1[%c0, %c0_0] : memref<16x128xf32, #tpu.memory_space<vmem>>, vector<16x128xf32>
    %c0_1 = arith.constant 0 : index
    %c0_2 = arith.constant 0 : index
    %1 = vector.load %arg2[%c0_1, %c0_2] : memref<16x128xf32, #tpu.memory_space<vmem>>, vector<16x128xf32>
    %2 = arith.subf %0, %1 : vector<16x128xf32>
    %3 = arith.mulf %2, %2 : vector<16x128xf32>
    %4 = vector.shape_cast %3 : vector<16x128xf32> to vector<2x8x128xf32>
    %cst = arith.constant dense<0.000000e+00> : vector<8x128xf32>
    %5 = vector.multi_reduction <add>, %4, %cst [0] : vector<2x8x128xf32> to vector<8x128xf32>
    %6 = vector.shape_cast %5 : vector<8x128xf32> to vector<1x8x128xf32>
    %c0_3 = arith.constant 0 : index
    %c0_4 = arith.constant 0 : index
    %c0_5 = arith.constant 0 : index
    %7 = vector.load %arg3[%c0_3, %c0_4, %c0_5] : memref<1x8x128xf32, #tpu.memory_space<vmem>>, vector<1x8x128xf32>
    tpu.vector_store %arg3[%c0_3, %c0_4, %c0_5], %6 {strides = array<i32>} : memref<1x8x128xf32, #tpu.memory_space<vmem>>, vector<1x8x128xf32>,
    return
  }
  func.func @transform_0(%arg0: i32) -> (i32, i32) {
    %c0_i32 = arith.constant 0 : i32
    %c0_i32_0 = arith.constant 0 : i32
    return %arg0, %c0_i32 : i32, i32
  }
  func.func @transform_1(%arg0: i32) -> (i32, i32) {
    %c0_i32 = arith.constant 0 : i32
    %c0_i32_0 = arith.constant 0 : i32
    return %arg0, %c0_i32 : i32, i32
  }
  func.func @transform_2(%arg0: i32) -> (i32, i32, i32) {
    %c0_i32 = arith.constant 0 : i32
    %c0_i32_0 = arith.constant 0 : i32
    %c0_i32_1 = arith.constant 0 : i32
    return %arg0, %c0_i32, %c0_i32_0 : i32, i32, i32
  }
}

</mosaic_0001>

<llo_original>
// kernel: tpu_custom_call.1
$region0: #{tpu_custom_call.1}
  #allocation0 [shape = 'u32[]', space=smem, size = 0x4, offset = 0x4, fixed_abs, tag = 'smem constant byte address 0x4 - core index']
  #allocation1 [shape = 'u32[144,128]{1,0:T(1,128)}', space=vmem, size = 0x12000, scoped, tag = 'internal scratch']
  %s0 = inlined_call_operand.hbm [shape: f32[16,128], index: 0, kind: input, shape index: {}]
  %s1 = inlined_call_operand.hbm [shape: f32[16,128], index: 1, kind: input, shape index: {}]
  %s2 = inlined_call_operand.hbm [shape: f32[1,8,128], index: 2, kind: output, shape index: {}]
  %s3 = sld [smem:[#allocation0]]
  $region26: #{tpu_custom_call.1} parent=0
    _
  %s5 = ssub.s32 1, %s3
  %s6 = scalar_select 0, %s5, %s3
  $region1: #{tpu_custom_call.1} parent=0
    #allocation2 [shape = 'u8[8192]{0}', space=vmem, size = 0x2000, scoped, tag = 'input window, operand 0, single buffered']
    #allocation3 [shape = 's32[1]{0}', space=sflag, size = 0x4, scoped, tag = 'scoped memory for tpu_custom_call.1']
    #allocation4 [shape = 's32[1]{0}', space=sflag, size = 0x4, scoped, tag = 'scoped memory for tpu_custom_call.1']
    #allocation5 [shape = 'u8[8192]{0}', space=vmem, size = 0x2000, scoped, tag = 'input window, operand 1, single buffered']
    #allocation6 [shape = 's32[1]{0}', space=sflag, size = 0x4, scoped, tag = 'scoped memory for tpu_custom_call.1']
    #allocation7 [shape = 'u8[4096]{0}', space=vmem, size = 0x1000, scoped, tag = 'output window, operand 0, single buffered']
    %7 = vsyncpa [#allocation3], 0
    %8 = vsyncpa [#allocation6], 0
    %9 = vsyncpa [#allocation4], 0
    // Predicated region
    $region2: #{tpu_custom_call.1} parent=1 // pred_check
      _
    $region3: #{tpu_custom_call.1} parent=1 // pred_check_branch
      %11 = sbr.rel (0) target = $region5
    $region4: #{tpu_custom_call.1} parent=1 // pred_region
      %s13 = ssub.s32 256, 256
      %14 = vsyncadd [#allocation3], %s13
      %s15 = sshll.u32 [#allocation2], 4
      %s16 = int_to_ptr.vmem [resolvable:$true] %s15
      %21 = dma.hbm_to_vmem [thread:$0]  %s0, 256, %s16, [#allocation3], 128, 128, 8
    $region5: #{tpu_custom_call.1} parent=1 // pred_fallthru
      _
    // Predicated region
    $region6: #{tpu_custom_call.1} parent=1 // pred_check
      _
    $region7: #{tpu_custom_call.1} parent=1 // pred_check_branch
      %23 = sbr.rel (0) target = $region9
    $region8: #{tpu_custom_call.1} parent=1 // pred_region
      %s25 = ssub.s32 256, 256
      %26 = vsyncadd [#allocation6], %s25
      %s27 = sshll.u32 [#allocation5], 4
      %s28 = int_to_ptr.vmem [resolvable:$true] %s27
      %33 = dma.hbm_to_vmem [thread:$0]  %s1, 256, %s28, [#allocation6], 128, 128, 8
    $region9: #{tpu_custom_call.1} parent=1 // pred_fallthru
      _
    // Predicated region
    $region10: #{tpu_custom_call.1} parent=1 // pred_check
      _
    $region11: #{tpu_custom_call.1} parent=1 // pred_check_branch
      %35 = sbr.rel (0) target = $region13
    $region12: #{tpu_custom_call.1} parent=1 // pred_region
      %36 = dma.done [#allocation3], 256
    $region13: #{tpu_custom_call.1} parent=1 // pred_fallthru
      _
    // Predicated region
    $region14: #{tpu_custom_call.1} parent=1 // pred_check
      _
    $region15: #{tpu_custom_call.1} parent=1 // pred_check_branch
      %38 = sbr.rel (0) target = $region17
    $region16: #{tpu_custom_call.1} parent=1 // pred_region
      %39 = dma.done [#allocation6], 256
    $region17: #{tpu_custom_call.1} parent=1 // pred_fallthru
      _
    %v40 = vld [vmem:[#allocation2] sm:$0xff]
    %v41 = vld [vmem:[#allocation2 + $0x8] sm:$0xff]
    %v42 = vld [vmem:[#allocation5] sm:$0xff]
    %v43 = vld [vmem:[#allocation5 + $0x8] sm:$0xff]
    %v44 = vsub.f32 %v40, %v42
    %v45 = vsub.f32 %v41, %v43
    %v46 = vmul.f32 %v44, %v44
    %v47 = vmul.f32 %v45, %v45
    %v48 = vadd.f32 %v46, %v47
    %49 = vst [vmem:[#allocation7] sm:$0xff] %v48
    // Predicated region
    $region18: #{tpu_custom_call.1} parent=1 // pred_check
      _
    $region19: #{tpu_custom_call.1} parent=1 // pred_check_branch
      %51 = sbr.rel (0) target = $region21
    $region20: #{tpu_custom_call.1} parent=1 // pred_region
      %s53 = ssub.s32 128, 128
      %54 = vsyncadd [#allocation4], %s53
      %s56 = sshll.u32 [#allocation7], 4
      %s57 = int_to_ptr.vmem [resolvable:$true] %s56
      %59 = dma.vmem_to_hbm [thread:$0]  %s57, 128, %s2, [#allocation4]
    $region21: #{tpu_custom_call.1} parent=1 // pred_fallthru
      _
    // Predicated region
    $region22: #{tpu_custom_call.1} parent=1 // pred_check
      _
    $region23: #{tpu_custom_call.1} parent=1 // pred_check_branch
      %61 = sbr.rel (0) target = $region25
    $region24: #{tpu_custom_call.1} parent=1 // pred_region
      %62 = dma.done [#allocation4], 128
    $region25: #{tpu_custom_call.1} parent=1 // pred_fallthru
      _
    %63 = vsyncpa [#allocation3], 1
    %64 = vsyncpa [#allocation6], 1
    %65 = vsyncpa [#allocation4], 1

</llo_original>
